<compile_context>
chip_gen: v7x
topology: tpu7x:2x2x1
jax: 0.10.0
libtpu: 0.0.40
codegen_flags: <defaults>
</compile_context>

<pallas_src>
import math

import numpy as np

import jax
import jax.numpy as jnp
from jax import lax
from jax.experimental import pallas as pl
from jax.experimental.pallas import tpu as pltpu


def _round_up(x, m):
    return ((x + m - 1) // m) * m


def _num_tensorcores():
    """Best-effort TensorCores-per-chip (2 on v7x, 1 on v5e/v6e)."""
    try:
        info = pltpu.get_tpu_info()
        for name in ("num_cores", "core_count", "num_tensorcores", "tensor_core_count"):
            v = getattr(info, name, None)
            if isinstance(v, int) and v > 0:
                return v
    except Exception:
        pass
    try:
        kind = str(getattr(jax.devices()[0], "device_kind", "")).lower()
        if "v7" in kind:
            return 2
    except Exception:
        pass
    return 1


# --------------------------- VPU pair-product path (n < 8) ---------------------------

def _make_pair_kernel(n):
    """s_ref/t_ref: (n, Rb, Dc) native-dtype blocks.
    out_ref: (1, n_rows, Dc) f32, resident accumulator across the reduction axis.
    Row layout (raw, UNcentered Grams; centering happens in the JAX epilogue):
        [0, n_ut)             S S^T upper triangle (i <= j), row-major
        [n_ut, n_ut + n*n)    S T^T full, row-major
        [n_ut + n*n, end)     T T^T upper triangle
    """

    def kernel(s_ref, t_ref, out_ref):
        k = pl.program_id(1)

        @pl.when(k == 0)
        def _init():
            out_ref[...] = jnp.zeros_like(out_ref)

        # Load each (Rb, Dc) slab exactly once per step; the unrolled pair loops
        # reuse these traced loads (no per-pair reloads in the HLO).  f32 products
        # for parity with the f32 reference.
        s = [s_ref[i].astype(jnp.float32) for i in range(n)]
        t = [t_ref[i].astype(jnp.float32) for i in range(n)]

        row = [0]

        def accum(a, b):
            r = row[0]
            # (Rb, Dc) -> (Dc,) sublane-partial; the tiny lane reduce finishes in glue
            # so every store stays lane-dense.
            out_ref[0, r] = out_ref[0, r] + jnp.sum(a * b, axis=0)
            row[0] = r + 1

        for i in range(n):                 # S S^T, symmetric: j >= i only
            for j in range(i, n):
                accum(s[i], s[j])
        for i in range(n):                 # S T^T, all pairs
            for j in range(n):
                accum(s[i], t[j])
        for i in range(n):                 # T T^T, symmetric: j >= i only
            for j in range(i, n):
                accum(t[i], t[j])

    return kernel


def _sym_from_upper(vals, n):
    iu, ju = np.triu_indices(n)
    g = jnp.zeros((n, n), jnp.float32).at[iu, ju].set(vals)
    return g + g.T - jnp.diag(jnp.diag(g))


def _raw_grams_vpu(S, T):
    n, D = S.shape
    itemsize = jnp.dtype(S.dtype).itemsize

    # Lane-dense feature layout (R rows x Dc lanes); Dc divides the (minimally
    # 128-padded) extent, so for e.g. D=1024 there is *no* padding at all.
    D_lane = _round_up(D, 128)
    Dc = 128
    for cand in (512, 384, 256, 128):
        if D_lane % cand == 0:
            Dc = cand
            break
    R = D_lane // Dc

    num_cores = _num_tensorcores()
    sub = 16 if itemsize == 2 else 8        # native sublane tile (bf16 vs f32)

    if n * R * Dc * itemsize <= (1 << 20) or R < 4 * sub:
        # Single block covers the full R extent (K == 1): the second-to-last block
        # dim equals the array dim, so no multiple-of-8 row padding is needed.
        P, K, Rb = 1, 1, R
    else:
        P = num_cores if (num_cores > 1 and R >= 8 * sub * num_cores) else 1
        # ~512 KB per operand block, and >= 4 reduction steps per chunk so the
        # input DMA overlaps compute.
        Rb = max(sub, ((512 * 1024) // (n * Dc * itemsize)) // sub * sub)
        rb_cap = (R // (4 * P)) // sub * sub
        if rb_cap >= sub:
            Rb = min(Rb, rb_cap)
        K = -(-R // (P * Rb))
    R_pad = P * K * Rb

    def prep(x):
        pad = R_pad * Dc - D
        if pad:                             # zero rows/lanes contribute 0 to raw Grams
            x = jnp.pad(x, ((0, 0), (0, pad)))
        return x.reshape(n, R_pad, Dc)

    Sp, Tp = prep(S), prep(T)

    n_ut = n * (n + 1) // 2
    n_rows = 2 * n_ut + n * n

    out = pl.pallas_call(
        _make_pair_kernel(n),
        out_shape=jax.ShapeDtypeStruct((P, n_rows, Dc), jnp.float32),
        grid_spec=pltpu.PrefetchScalarGridSpec(
            num_scalar_prefetch=0,
            grid=(P, K),
            in_specs=[
                pl.BlockSpec((n, Rb, Dc), lambda p, k: (0, p * K + k, 0)),
                pl.BlockSpec((n, Rb, Dc), lambda p, k: (0, p * K + k, 0)),
            ],
            out_specs=pl.BlockSpec((1, n_rows, Dc), lambda p, k: (p, 0, 0)),
        ),
        compiler_params=pltpu.CompilerParams(
            dimension_semantics=("parallel", "arbitrary"),
            vmem_limit_bytes=32 * 1024 * 1024,
        ),
        cost_estimate=pl.CostEstimate(
            flops=int(2 * n_rows * R_pad * Dc),
            transcendentals=0,
            bytes_accessed=int(2 * n * R_pad * Dc * itemsize + P * n_rows * Dc * 4),
        ),
    )(Sp, Tp)

    vals = jnp.sum(out, axis=(0, 2))        # finish lane + chunk reduction (tiny)
    gss = _sym_from_upper(vals[:n_ut], n)
    gst = vals[n_ut:n_ut + n * n].reshape(n, n)
    gtt = _sym_from_upper(vals[n_ut + n * n:], n)
    return gss, gst, gtt


# --------------------------------- MXU path (n >= 8) ---------------------------------

def _mxu_gram_kernel(s_ref, t_ref, out_ref):
    """Three tiny (n, n) MXU matmuls contracted over the streamed feature chunk.
    out_ref: (1, 3, n, n) f32 resident accumulator."""
    k = pl.program_id(1)

    @pl.when(k == 0)
    def _init():
        out_ref[...] = jnp.zeros_like(out_ref)

    s = s_ref[...]
    t = t_ref[...]
    nt = (((1,), (1,)), ((), ()))           # contract the feature (lane) dim of both
    gss = lax.dot_general(s, s, nt, preferred_element_type=jnp.float32)
    gst = lax.dot_general(s, t, nt, preferred_element_type=jnp.float32)
    gtt = lax.dot_general(t, t, nt, preferred_element_type=jnp.float32)
    out_ref[0, 0] = out_ref[0, 0] + gss
    out_ref[0, 1] = out_ref[0, 1] + gst
    out_ref[0, 2] = out_ref[0, 2] + gtt


def _raw_grams_mxu(S, T):
    n, D = S.shape
    itemsize = jnp.dtype(S.dtype).itemsize
    num_cores = _num_tensorcores()

    D_lane = _round_up(D, 128)
    if n * D_lane * itemsize <= (1 << 21):
        P, K, Dk = 1, 1, D_lane             # single block, no reduction grid
    else:
        target = max(128, min(D_lane, ((512 * 1024) // (n * itemsize)) // 128 * 128))
        Dk = 128
        for cand in range(target, 127, -128):   # largest 128-multiple divisor <= target
            if D_lane % cand == 0:
                Dk = cand
                break
        kt = D_lane // Dk
        P = num_cores if (num_cores > 1 and kt >= 2 * num_cores) else 1
        K = -(-kt // P)
    D_pad = P * K * Dk

    def prep(x):
        if D_pad != D:                      # zero features contribute 0 to raw Grams
            x = jnp.pad(x, ((0, 0), (0, D_pad - D)))
        return x

    Sp, Tp = prep(S), prep(T)

    out = pl.pallas_call(
        _mxu_gram_kernel,
        out_shape=jax.ShapeDtypeStruct((P, 3, n, n), jnp.float32),
        grid_spec=pltpu.PrefetchScalarGridSpec(
            num_scalar_prefetch=0,
            grid=(P, K),
            in_specs=[
                pl.BlockSpec((n, Dk), lambda p, k: (0, p * K + k)),
                pl.BlockSpec((n, Dk), lambda p, k: (0, p * K + k)),
            ],
            out_specs=pl.BlockSpec((1, 3, n, n), lambda p, k: (p, 0, 0, 0)),
        ),
        compiler_params=pltpu.CompilerParams(
            dimension_semantics=("parallel", "arbitrary"),
            vmem_limit_bytes=32 * 1024 * 1024,
        ),
        cost_estimate=pl.CostEstimate(
            flops=int(2 * 3 * n * n * D_pad),
            transcendentals=0,
            bytes_accessed=int(2 * n * D_pad * itemsize + P * 3 * n * n * 4),
        ),
    )(Sp, Tp)

    g = jnp.sum(out, axis=0)                # (3, n, n)
    return g[0], g[1], g[2]


# ----------------------------- bilinear downsample glue -------------------------------

def _bilinear_downsample(x, factor):
    """Matches F.interpolate(x, scale_factor=1/factor, mode='bilinear')
    (align_corners=False, no antialias). Pure-JAX preprocessing glue."""
    n, c, h, w = x.shape
    out_h = int(math.floor(h / factor))
    out_w = int(math.floor(w / factor))
    orig_dtype = x.dtype
    x = x.astype(jnp.float32)

    def resize_axis(arr, in_size, out_size, axis):
        scale = in_size / out_size
        dst = jnp.arange(out_size, dtype=jnp.float32)
        src = jnp.maximum((dst + 0.5) * scale - 0.5, 0.0)
        i0 = jnp.clip(jnp.floor(src).astype(jnp.int32), 0, in_size - 1)
        i1 = jnp.minimum(i0 + 1, in_size - 1)
        w1 = src - i0.astype(jnp.float32)
        shape = [1] * arr.ndim
        shape[axis] = out_size
        a0 = jnp.take(arr, i0, axis=axis)
        a1 = jnp.take(arr, i1, axis=axis)
        return a0 * (1.0 - w1).reshape(shape) + a1 * w1.reshape(shape)

    x = resize_axis(x, h, out_h, 2)
    x = resize_axis(x, w, out_w, 3)
    return x.astype(orig_dtype)


# ------------------------------------ public wrapper ----------------------------------

def coral_loss(src_out, tgt_out, coral_downsample=1, prior=None):
    if prior is not None:
        # TODO(synk): the `prior` path compares a precomputed dense D x D prior
        # covariance to CT and does not collapse to n x n Grams; not implemented here.
        raise NotImplementedError("CoralLoss prior-covariance path not implemented")

    if coral_downsample > 1:
        tgt_out = _bilinear_downsample(tgt_out, coral_downsample)
        src_out = _bilinear_downsample(src_out, coral_downsample)

    n, c, h, w = tgt_out.shape
    D = c * h * w
    # NOTE: n == 1 divides by (n-1)^2 == 0, same behaviour as the PyTorch reference.
    S = src_out.reshape(n, D)               # native dtype on the HBM wire
    T = tgt_out.reshape(n, D)

    if n >= 8:
        gss, gst, gtt = _raw_grams_mxu(S, T)
    else:
        gss, gst, gtt = _raw_grams_vpu(S, T)

    # Centering moved out of the kernel: A = C S with C = I - 11^T/n, so
    # A A^T = C (S S^T) C = G - colmean - rowmean + grandmean  (O(n^2) glue).
    def _center(g):
        col = jnp.mean(g, axis=0, keepdims=True)
        row = jnp.mean(g, axis=1, keepdims=True)
        return g - col - row + jnp.mean(g)

    gaa, gab, gbb = _center(gss), _center(gst), _center(gtt)
    fro2 = jnp.maximum(
        jnp.sum(gaa * gaa) - 2.0 * jnp.sum(gab * gab) + jnp.sum(gbb * gbb), 0.0
    ) / jnp.float32((n - 1) ** 2)
    return jnp.sqrt(fro2) / (4.0 * float(D) ** 2)


if __name__ == "__main__":
    key = jax.random.PRNGKey(0)
    k1, k2, k3, k4 = jax.random.split(key, 4)

    # pure-JAX reference implementing the literal D x D covariance formula
    def coral_ref(s, t):
        nb, cc, hh, ww = t.shape
        Sr = s.reshape(nb, -1).astype(jnp.float32)
        Tr = t.reshape(nb, -1).astype(jnp.float32)
        ones = jnp.ones((1, nb), jnp.float32)
        us = ones @ Sr
        cs = (Sr.T @ Sr - us.T @ us / nb) / (nb - 1)
        ut = ones @ Tr
        ct = (Tr.T @ Tr - ut.T @ ut / nb) / (nb - 1)
        return jnp.sqrt(jnp.sum((cs - ct) ** 2)) / (4.0 * float(cc * hh * ww) ** 2)

    # small-batch path (VPU pair-product kernel): n=2, c=4, h=w=16
    B, C, H, W = 2, 4, 16, 16
    src = jax.random.normal(k1, (B, C, H, W), jnp.float32)
    tgt = jax.random.normal(k2, (B, C, H, W), jnp.float32)
    loss = coral_loss(src, tgt, coral_downsample=1)
    jax.block_until_ready(loss)
    ref = coral_ref(src, tgt)
    rel = abs(float(loss) - float(ref)) / max(abs(float(ref)), 1e-12)
    assert rel < 1e-2, f"VPU path mismatch: kernel={float(loss)} ref={float(ref)} rel={rel}"

    # downsampled path (coral_downsample=2)
    loss_ds = coral_loss(src, tgt, coral_downsample=2)
    jax.block_until_ready(loss_ds)
    ref_ds = coral_ref(_bilinear_downsample(src, 2), _bilinear_downsample(tgt, 2))
    rel_ds = abs(float(loss_ds) - float(ref_ds)) / max(abs(float(ref_ds)), 1e-12)
    assert rel_ds < 1e-2, f"downsample path mismatch: {float(loss_ds)} vs {float(ref_ds)}"

    # larger-batch path (MXU Gram kernel): n=8
    src8 = jax.random.normal(k3, (8, C, H, W), jnp.float32)
    tgt8 = jax.random.normal(k4, (8, C, H, W), jnp.float32)
    loss8 = coral_loss(src8, tgt8, coral_downsample=1)
    jax.block_until_ready(loss8)
    ref8 = coral_ref(src8, tgt8)
    rel8 = abs(float(loss8) - float(ref8)) / max(abs(float(ref8)), 1e-12)
    assert rel8 < 1e-2, f"MXU path mismatch: kernel={float(loss8)} ref={float(ref8)} rel={rel8}"

    print("KERNEL_OK")
</pallas_src>

<mosaic_0001>
module attributes {stable_mosaic.version = 11 : i64} {
  func.func @kernel(%arg0: i32, %arg1: i32, %arg2: memref<2x2x512xf32, #tpu.memory_space<vmem>>, %arg3: memref<2x2x512xf32, #tpu.memory_space<vmem>>, %arg4: memref<1x10x512xf32, #tpu.memory_space<vmem>>) attributes {dimension_semantics = [#tpu.dimension_semantics<parallel>, #tpu.dimension_semantics<arbitrary>], iteration_bounds = array<i64: 1, 1>, scalar_prefetch = 0 : i64, scratch_operands = 0 : i64, tpu.core_type = #tpu.core_type<tc>, window_params = [{transform_indices = @transform_0, window_bounds = array<i64: 2, 2, 512>}, {transform_indices = @transform_1, window_bounds = array<i64: 2, 2, 512>}, {transform_indices = @transform_2, window_bounds = array<i64: 1, 10, 512>}]} {
    %c0_i32 = arith.constant 0 : i32
    %0 = arith.cmpi eq, %arg1, %c0_i32 : i32
    %1 = arith.extui %0 : i1 to i32
    %c0_i32_0 = arith.constant 0 : i32
    %2 = arith.cmpi ne, %1, %c0_i32_0 : i32
    scf.if %2 {
      %cst_72 = arith.constant 0.000000e+00 : f32
      %91 = vector.broadcast %cst_72 : f32 to vector<1x10x512xf32>
      %c0_73 = arith.constant 0 : index
      %c0_74 = arith.constant 0 : index
      %c0_75 = arith.constant 0 : index
      %92 = vector.load %arg4[%c0_73, %c0_74, %c0_75] : memref<1x10x512xf32, #tpu.memory_space<vmem>>, vector<1x10x512xf32>
      tpu.vector_store %arg4[%c0_73, %c0_74, %c0_75], %91 {strides = array<i32>} : memref<1x10x512xf32, #tpu.memory_space<vmem>>, vector<1x10x512xf32>,
    } else {
    }
    %c0 = arith.constant 0 : index
    %c0_1 = arith.constant 0 : index
    %c0_2 = arith.constant 0 : index
    %3 = vector.load %arg2[%c0, %c0_1, %c0_2] : memref<2x2x512xf32, #tpu.memory_space<vmem>>, vector<1x2x512xf32>
    %4 = vector.shape_cast %3 : vector<1x2x512xf32> to vector<2x512xf32>
    %c1 = arith.constant 1 : index
    %c0_3 = arith.constant 0 : index
    %c0_4 = arith.constant 0 : index
    %5 = vector.load %arg2[%c1, %c0_3, %c0_4] : memref<2x2x512xf32, #tpu.memory_space<vmem>>, vector<1x2x512xf32>
    %6 = vector.shape_cast %5 : vector<1x2x512xf32> to vector<2x512xf32>
    %c0_5 = arith.constant 0 : index
    %c0_6 = arith.constant 0 : index
    %c0_7 = arith.constant 0 : index
    %7 = vector.load %arg3[%c0_5, %c0_6, %c0_7] : memref<2x2x512xf32, #tpu.memory_space<vmem>>, vector<1x2x512xf32>
    %8 = vector.shape_cast %7 : vector<1x2x512xf32> to vector<2x512xf32>
    %c1_8 = arith.constant 1 : index
    %c0_9 = arith.constant 0 : index
    %c0_10 = arith.constant 0 : index
    %9 = vector.load %arg3[%c1_8, %c0_9, %c0_10] : memref<2x2x512xf32, #tpu.memory_space<vmem>>, vector<1x2x512xf32>
    %10 = vector.shape_cast %9 : vector<1x2x512xf32> to vector<2x512xf32>
    %c0_11 = arith.constant 0 : index
    %c0_12 = arith.constant 0 : index
    %c0_13 = arith.constant 0 : index
    %11 = vector.load %arg4[%c0_11, %c0_12, %c0_13] : memref<1x10x512xf32, #tpu.memory_space<vmem>>, vector<1x1x512xf32>
    %12 = vector.shape_cast %11 : vector<1x1x512xf32> to vector<512xf32>
    %13 = arith.mulf %4, %4 : vector<2x512xf32>
    %cst = arith.constant dense<0.000000e+00> : vector<512xf32>
    %14 = vector.multi_reduction <add>, %13, %cst [0] : vector<2x512xf32> to vector<512xf32>
    %15 = arith.addf %12, %14 : vector<512xf32>
    %c0_14 = arith.constant 0 : index
    %c0_15 = arith.constant 0 : index
    %c0_16 = arith.constant 0 : index
    %16 = vector.load %arg4[%c0_14, %c0_15, %c0_16] : memref<1x10x512xf32, #tpu.memory_space<vmem>>, vector<1x1x512xf32>
    %17 = vector.shape_cast %16 : vector<1x1x512xf32> to vector<512xf32>
    %18 = vector.shape_cast %15 : vector<512xf32> to vector<1x1x512xf32>
    tpu.vector_store %arg4[%c0_14, %c0_15, %c0_16], %18 {strides = array<i32>} : memref<1x10x512xf32, #tpu.memory_space<vmem>>, vector<1x1x512xf32>,
    %c0_17 = arith.constant 0 : index
    %c1_18 = arith.constant 1 : index
    %c0_19 = arith.constant 0 : index
    %19 = vector.load %arg4[%c0_17, %c1_18, %c0_19] : memref<1x10x512xf32, #tpu.memory_space<vmem>>, vector<1x1x512xf32>
    %20 = vector.shape_cast %19 : vector<1x1x512xf32> to vector<512xf32>
    %21 = arith.mulf %4, %6 : vector<2x512xf32>
    %cst_20 = arith.constant dense<0.000000e+00> : vector<512xf32>
    %22 = vector.multi_reduction <add>, %21, %cst_20 [0] : vector<2x512xf32> to vector<512xf32>
    %23 = arith.addf %20, %22 : vector<512xf32>
    %c0_21 = arith.constant 0 : index
    %c1_22 = arith.constant 1 : index
    %c0_23 = arith.constant 0 : index
    %24 = vector.load %arg4[%c0_21, %c1_22, %c0_23] : memref<1x10x512xf32, #tpu.memory_space<vmem>>, vector<1x1x512xf32>
    %25 = vector.shape_cast %24 : vector<1x1x512xf32> to vector<512xf32>
    %26 = vector.shape_cast %23 : vector<512xf32> to vector<1x1x512xf32>
    tpu.vector_store %arg4[%c0_21, %c1_22, %c0_23], %26 {strides = array<i32>} : memref<1x10x512xf32, #tpu.memory_space<vmem>>, vector<1x1x512xf32>,
    %c0_24 = arith.constant 0 : index
    %c2 = arith.constant 2 : index
    %c0_25 = arith.constant 0 : index
    %27 = vector.load %arg4[%c0_24, %c2, %c0_25] : memref<1x10x512xf32, #tpu.memory_space<vmem>>, vector<1x1x512xf32>
    %28 = vector.shape_cast %27 : vector<1x1x512xf32> to vector<512xf32>
    %29 = arith.mulf %6, %6 : vector<2x512xf32>
    %cst_26 = arith.constant dense<0.000000e+00> : vector<512xf32>
    %30 = vector.multi_reduction <add>, %29, %cst_26 [0] : vector<2x512xf32> to vector<512xf32>
    %31 = arith.addf %28, %30 : vector<512xf32>
    %c0_27 = arith.constant 0 : index
    %c2_28 = arith.constant 2 : index
    %c0_29 = arith.constant 0 : index
    %32 = vector.load %arg4[%c0_27, %c2_28, %c0_29] : memref<1x10x512xf32, #tpu.memory_space<vmem>>, vector<1x1x512xf32>
    %33 = vector.shape_cast %32 : vector<1x1x512xf32> to vector<512xf32>
    %34 = vector.shape_cast %31 : vector<512xf32> to vector<1x1x512xf32>
    tpu.vector_store %arg4[%c0_27, %c2_28, %c0_29], %34 {strides = array<i32>} : memref<1x10x512xf32, #tpu.memory_space<vmem>>, vector<1x1x512xf32>,
    %c0_30 = arith.constant 0 : index
    %c3 = arith.constant 3 : index
    %c0_31 = arith.constant 0 : index
    %35 = vector.load %arg4[%c0_30, %c3, %c0_31] : memref<1x10x512xf32, #tpu.memory_space<vmem>>, vector<1x1x512xf32>
    %36 = vector.shape_cast %35 : vector<1x1x512xf32> to vector<512xf32>
    %37 = arith.mulf %4, %8 : vector<2x512xf32>
    %cst_32 = arith.constant dense<0.000000e+00> : vector<512xf32>
    %38 = vector.multi_reduction <add>, %37, %cst_32 [0] : vector<2x512xf32> to vector<512xf32>
    %39 = arith.addf %36, %38 : vector<512xf32>
    %c0_33 = arith.constant 0 : index
    %c3_34 = arith.constant 3 : index
    %c0_35 = arith.constant 0 : index
    %40 = vector.load %arg4[%c0_33, %c3_34, %c0_35] : memref<1x10x512xf32, #tpu.memory_space<vmem>>, vector<1x1x512xf32>
    %41 = vector.shape_cast %40 : vector<1x1x512xf32> to vector<512xf32>
    %42 = vector.shape_cast %39 : vector<512xf32> to vector<1x1x512xf32>
    tpu.vector_store %arg4[%c0_33, %c3_34, %c0_35], %42 {strides = array<i32>} : memref<1x10x512xf32, #tpu.memory_space<vmem>>, vector<1x1x512xf32>,
    %c0_36 = arith.constant 0 : index
    %c4 = arith.constant 4 : index
    %c0_37 = arith.constant 0 : index
    %43 = vector.load %arg4[%c0_36, %c4, %c0_37] : memref<1x10x512xf32, #tpu.memory_space<vmem>>, vector<1x1x512xf32>
    %44 = vector.shape_cast %43 : vector<1x1x512xf32> to vector<512xf32>
    %45 = arith.mulf %4, %10 : vector<2x512xf32>
    %cst_38 = arith.constant dense<0.000000e+00> : vector<512xf32>
    %46 = vector.multi_reduction <add>, %45, %cst_38 [0] : vector<2x512xf32> to vector<512xf32>
    %47 = arith.addf %44, %46 : vector<512xf32>
    %c0_39 = arith.constant 0 : index
    %c4_40 = arith.constant 4 : index
    %c0_41 = arith.constant 0 : index
    %48 = vector.load %arg4[%c0_39, %c4_40, %c0_41] : memref<1x10x512xf32, #tpu.memory_space<vmem>>, vector<1x1x512xf32>
    %49 = vector.shape_cast %48 : vector<1x1x512xf32> to vector<512xf32>
    %50 = vector.shape_cast %47 : vector<512xf32> to vector<1x1x512xf32>
    tpu.vector_store %arg4[%c0_39, %c4_40, %c0_41], %50 {strides = array<i32>} : memref<1x10x512xf32, #tpu.memory_space<vmem>>, vector<1x1x512xf32>,
    %c0_42 = arith.constant 0 : index
    %c5 = arith.constant 5 : index
    %c0_43 = arith.constant 0 : index
    %51 = vector.load %arg4[%c0_42, %c5, %c0_43] : memref<1x10x512xf32, #tpu.memory_space<vmem>>, vector<1x1x512xf32>
    %52 = vector.shape_cast %51 : vector<1x1x512xf32> to vector<512xf32>
    %53 = arith.mulf %6, %8 : vector<2x512xf32>
    %cst_44 = arith.constant dense<0.000000e+00> : vector<512xf32>
    %54 = vector.multi_reduction <add>, %53, %cst_44 [0] : vector<2x512xf32> to vector<512xf32>
    %55 = arith.addf %52, %54 : vector<512xf32>
    %c0_45 = arith.constant 0 : index
    %c5_46 = arith.constant 5 : index
    %c0_47 = arith.constant 0 : index
    %56 = vector.load %arg4[%c0_45, %c5_46, %c0_47] : memref<1x10x512xf32, #tpu.memory_space<vmem>>, vector<1x1x512xf32>
    %57 = vector.shape_cast %56 : vector<1x1x512xf32> to vector<512xf32>
    %58 = vector.shape_cast %55 : vector<512xf32> to vector<1x1x512xf32>
    tpu.vector_store %arg4[%c0_45, %c5_46, %c0_47], %58 {strides = array<i32>} : memref<1x10x512xf32, #tpu.memory_space<vmem>>, vector<1x1x512xf32>,
    %c0_48 = arith.constant 0 : index
    %c6 = arith.constant 6 : index
    %c0_49 = arith.constant 0 : index
    %59 = vector.load %arg4[%c0_48, %c6, %c0_49] : memref<1x10x512xf32, #tpu.memory_space<vmem>>, vector<1x1x512xf32>
    %60 = vector.shape_cast %59 : vector<1x1x512xf32> to vector<512xf32>
    %61 = arith.mulf %6, %10 : vector<2x512xf32>
    %cst_50 = arith.constant dense<0.000000e+00> : vector<512xf32>
    %62 = vector.multi_reduction <add>, %61, %cst_50 [0] : vector<2x512xf32> to vector<512xf32>
    %63 = arith.addf %60, %62 : vector<512xf32>
    %c0_51 = arith.constant 0 : index
    %c6_52 = arith.constant 6 : index
    %c0_53 = arith.constant 0 : index
    %64 = vector.load %arg4[%c0_51, %c6_52, %c0_53] : memref<1x10x512xf32, #tpu.memory_space<vmem>>, vector<1x1x512xf32>
    %65 = vector.shape_cast %64 : vector<1x1x512xf32> to vector<512xf32>
    %66 = vector.shape_cast %63 : vector<512xf32> to vector<1x1x512xf32>
    tpu.vector_store %arg4[%c0_51, %c6_52, %c0_53], %66 {strides = array<i32>} : memref<1x10x512xf32, #tpu.memory_space<vmem>>, vector<1x1x512xf32>,
    %c0_54 = arith.constant 0 : index
    %c7 = arith.constant 7 : index
    %c0_55 = arith.constant 0 : index
    %67 = vector.load %arg4[%c0_54, %c7, %c0_55] : memref<1x10x512xf32, #tpu.memory_space<vmem>>, vector<1x1x512xf32>
    %68 = vector.shape_cast %67 : vector<1x1x512xf32> to vector<512xf32>
    %69 = arith.mulf %8, %8 : vector<2x512xf32>
    %cst_56 = arith.constant dense<0.000000e+00> : vector<512xf32>
    %70 = vector.multi_reduction <add>, %69, %cst_56 [0] : vector<2x512xf32> to vector<512xf32>
    %71 = arith.addf %68, %70 : vector<512xf32>
    %c0_57 = arith.constant 0 : index
    %c7_58 = arith.constant 7 : index
    %c0_59 = arith.constant 0 : index
    %72 = vector.load %arg4[%c0_57, %c7_58, %c0_59] : memref<1x10x512xf32, #tpu.memory_space<vmem>>, vector<1x1x512xf32>
    %73 = vector.shape_cast %72 : vector<1x1x512xf32> to vector<512xf32>
    %74 = vector.shape_cast %71 : vector<512xf32> to vector<1x1x512xf32>
    tpu.vector_store %arg4[%c0_57, %c7_58, %c0_59], %74 {strides = array<i32>} : memref<1x10x512xf32, #tpu.memory_space<vmem>>, vector<1x1x512xf32>,
    %c0_60 = arith.constant 0 : index
    %c8 = arith.constant 8 : index
    %c0_61 = arith.constant 0 : index
    %75 = vector.load %arg4[%c0_60, %c8, %c0_61] : memref<1x10x512xf32, #tpu.memory_space<vmem>>, vector<1x1x512xf32>
    %76 = vector.shape_cast %75 : vector<1x1x512xf32> to vector<512xf32>
    %77 = arith.mulf %8, %10 : vector<2x512xf32>
    %cst_62 = arith.constant dense<0.000000e+00> : vector<512xf32>
    %78 = vector.multi_reduction <add>, %77, %cst_62 [0] : vector<2x512xf32> to vector<512xf32>
    %79 = arith.addf %76, %78 : vector<512xf32>
    %c0_63 = arith.constant 0 : index
    %c8_64 = arith.constant 8 : index
    %c0_65 = arith.constant 0 : index
    %80 = vector.load %arg4[%c0_63, %c8_64, %c0_65] : memref<1x10x512xf32, #tpu.memory_space<vmem>>, vector<1x1x512xf32>
    %81 = vector.shape_cast %80 : vector<1x1x512xf32> to vector<512xf32>
    %82 = vector.shape_cast %79 : vector<512xf32> to vector<1x1x512xf32>
    tpu.vector_store %arg4[%c0_63, %c8_64, %c0_65], %82 {strides = array<i32>} : memref<1x10x512xf32, #tpu.memory_space<vmem>>, vector<1x1x512xf32>,
    %c0_66 = arith.constant 0 : index
    %c9 = arith.constant 9 : index
    %c0_67 = arith.constant 0 : index
    %83 = vector.load %arg4[%c0_66, %c9, %c0_67] : memref<1x10x512xf32, #tpu.memory_space<vmem>>, vector<1x1x512xf32>
    %84 = vector.shape_cast %83 : vector<1x1x512xf32> to vector<512xf32>
    %85 = arith.mulf %10, %10 : vector<2x512xf32>
    %cst_68 = arith.constant dense<0.000000e+00> : vector<512xf32>
    %86 = vector.multi_reduction <add>, %85, %cst_68 [0] : vector<2x512xf32> to vector<512xf32>
    %87 = arith.addf %84, %86 : vector<512xf32>
    %c0_69 = arith.constant 0 : index
    %c9_70 = arith.constant 9 : index
    %c0_71 = arith.constant 0 : index
    %88 = vector.load %arg4[%c0_69, %c9_70, %c0_71] : memref<1x10x512xf32, #tpu.memory_space<vmem>>, vector<1x1x512xf32>
    %89 = vector.shape_cast %88 : vector<1x1x512xf32> to vector<512xf32>
    %90 = vector.shape_cast %87 : vector<512xf32> to vector<1x1x512xf32>
    tpu.vector_store %arg4[%c0_69, %c9_70, %c0_71], %90 {strides = array<i32>} : memref<1x10x512xf32, #tpu.memory_space<vmem>>, vector<1x1x512xf32>,
    return
  }
  func.func @transform_0(%arg0: i32, %arg1: i32) -> (i32, i32, i32) {
    %c1_i32 = arith.constant 1 : i32
    %0 = arith.muli %arg0, %c1_i32 : i32
    %1 = arith.addi %0, %arg1 : i32
    %c0_i32 = arith.constant 0 : i32
    %c0_i32_0 = arith.constant 0 : i32
    %c0_i32_1 = arith.constant 0 : i32
    return %c0_i32, %1, %c0_i32_0 : i32, i32, i32
  }
  func.func @transform_1(%arg0: i32, %arg1: i32) -> (i32, i32, i32) {
    %c1_i32 = arith.constant 1 : i32
    %0 = arith.muli %arg0, %c1_i32 : i32
    %1 = arith.addi %0, %arg1 : i32
    %c0_i32 = arith.constant 0 : i32
    %c0_i32_0 = arith.constant 0 : i32
    %c0_i32_1 = arith.constant 0 : i32
    return %c0_i32, %1, %c0_i32_0 : i32, i32, i32
  }
  func.func @transform_2(%arg0: i32, %arg1: i32) -> (i32, i32, i32) {
    %c0_i32 = arith.constant 0 : i32
    %c0_i32_0 = arith.constant 0 : i32
    %c0_i32_1 = arith.constant 0 : i32
    return %arg0, %c0_i32, %c0_i32_0 : i32, i32, i32
  }
}

</mosaic_0001>

<llo_original>
// kernel: tpu_custom_call.1
$region0: #{tpu_custom_call.1}
  #allocation0 [shape = 'u32[]', space=smem, size = 0x4, offset = 0x4, fixed_abs, tag = 'smem constant byte address 0x4 - core index']
  #allocation1 [shape = 'u32[144,128]{1,0:T(1,128)}', space=vmem, size = 0x12000, scoped, tag = 'internal scratch']
  %s0 = inlined_call_operand.hbm [shape: f32[2,2,512], index: 0, kind: input, shape index: {}]
  %s1 = inlined_call_operand.hbm [shape: f32[2,2,512], index: 1, kind: input, shape index: {}]
  %s2 = inlined_call_operand.vmem [shape: f32[1,10,512], index: 2, kind: output, shape index: {}]
  %s3 = sld [smem:[#allocation0]]
  $region30: #{tpu_custom_call.1} parent=0
    _
  %s5 = ssub.s32 1, %s3
  %s6 = scalar_select 0, %s5, %s3
  $region1: #{tpu_custom_call.1} parent=0
    #allocation2 [shape = 'u8[8192]{0}', space=vmem, size = 0x2000, scoped, tag = 'input window, operand 0, single buffered']
    #allocation3 [shape = 's32[1]{0}', space=sflag, size = 0x4, scoped, tag = 'scoped memory for tpu_custom_call.1']
    #allocation4 [shape = 'u8[8192]{0}', space=vmem, size = 0x2000, scoped, tag = 'input window, operand 1, single buffered']
    #allocation5 [shape = 's32[1]{0}', space=sflag, size = 0x4, scoped, tag = 'scoped memory for tpu_custom_call.1']
    %7 = vsyncpa [#allocation3], 0
    %8 = vsyncpa [#allocation5], 0
    // Predicated region
    $region2: #{tpu_custom_call.1} parent=1 // pred_check
      _
    $region3: #{tpu_custom_call.1} parent=1 // pred_check_branch
      %10 = sbr.rel (0) target = $region5
    $region4: #{tpu_custom_call.1} parent=1 // pred_region
      %s11 = sadd.s32 0, 0
      %s13 = ssub.s32 256, 256
      %14 = vsyncadd [#allocation3], %s13
      %s15 = smul.addr %s11, 4
      %s16 = smul.addr %s15, 32
      %s17 = scalar_lea.hbm %s0, %s16
      %s18 = sshll.u32 [#allocation2], 4
      %s19 = int_to_ptr.vmem [resolvable:$true] %s18
      %24 = dma.hbm_to_vmem [thread:$0]  %s17, 256, %s19, [#allocation3], 128, 128, 8
    $region5: #{tpu_custom_call.1} parent=1 // pred_fallthru
      _
    // Predicated region
    $region6: #{tpu_custom_call.1} parent=1 // pred_check
      _
    $region7: #{tpu_custom_call.1} parent=1 // pred_check_branch
      %26 = sbr.rel (0) target = $region9
    $region8: #{tpu_custom_call.1} parent=1 // pred_region
      %s27 = sadd.s32 0, 0
      %s29 = ssub.s32 256, 256
      %30 = vsyncadd [#allocation5], %s29
      %s31 = smul.addr %s27, 4
      %s32 = smul.addr %s31, 32
      %s33 = scalar_lea.hbm %s1, %s32
      %s34 = sshll.u32 [#allocation4], 4
      %s35 = int_to_ptr.vmem [resolvable:$true] %s34
      %40 = dma.hbm_to_vmem [thread:$0]  %s33, 256, %s35, [#allocation5], 128, 128, 8
    $region9: #{tpu_custom_call.1} parent=1 // pred_fallthru
      _
    // Predicated region
    $region10: #{tpu_custom_call.1} parent=1 // pred_check
      _
    $region11: #{tpu_custom_call.1} parent=1 // pred_check_branch
      %42 = sbr.rel (0) target = $region13
    $region12: #{tpu_custom_call.1} parent=1 // pred_region
      %43 = dma.done [#allocation3], 256
    $region13: #{tpu_custom_call.1} parent=1 // pred_fallthru
      _
    // Predicated region
    $region14: #{tpu_custom_call.1} parent=1 // pred_check
      _
    $region15: #{tpu_custom_call.1} parent=1 // pred_check_branch
      %45 = sbr.rel (0) target = $region17
    $region16: #{tpu_custom_call.1} parent=1 // pred_region
      %46 = dma.done [#allocation5], 256
    $region17: #{tpu_custom_call.1} parent=1 // pred_fallthru
      _
    %s47 = sadd.s32 0, 0
    %s48 = sadd.s32 0, 0
    %p49 = scmp.eq.s32.totalorder 0, 0
    // Predicated region
    $region18: #{tpu_custom_call.1} parent=1 // pred_check
      %p50 = pneg %p49
    $region19: #{tpu_custom_call.1} parent=1 // pred_check_branch
      %52 = sbr.rel (%p50) target = $region21
    $region20: #{tpu_custom_call.1} parent=1 // pred_region
      %53 = vst [vmem:[%s2] sm:$0xff] 0.0
      %54 = vst [vmem:[%s2 + $0x8] sm:$0xff] 0.0
      %55 = vst [vmem:[%s2 + $0x10] sm:$0xff] 0.0
      %56 = vst [vmem:[%s2 + $0x18] sm:$0xff] 0.0
      %57 = vst [vmem:[%s2 + $0x20] sm:$0x3] 0.0
      %58 = vst [vmem:[%s2 + $0x28] sm:$0x3] 0.0
      %59 = vst [vmem:[%s2 + $0x30] sm:$0x3] 0.0
      %60 = vst [vmem:[%s2 + $0x38] sm:$0x3] 0.0
    $region21: #{tpu_custom_call.1} parent=1 // pred_fallthru
      _
    %v61 = vld [vmem:[#allocation2] sm:$0xff]
    %s62 = scalar_lea.vmem [#allocation2], 8
    %v63 = vld [vmem:[%s62] sm:$0xff]
    %v64 = vld [vmem:[#allocation4] sm:$0xff]
    %s65 = scalar_lea.vmem [#allocation4], 8
    %v66 = vld [vmem:[%s65] sm:$0xff]
    %v67 = vld [vmem:[%s2] ss:$8 sm:$0xf]
    %v68 = vmul.f32 %v61, %v61
    %v70 = vcombine.high %v68, %v68
    %v72 = vunpack.c.l.s4 1983009808
    %v73 = vunpack.c.0.s8 %v72
    %v74 = vlaneseq
    %v75 = vshrl.u32 %v74, 7
    %v76 = vsub.s32 %v73, %v75
    %v77 = vrot.slane %v68, %v76
    %v79 = vunpack.c.l.s4 1983009808
    %v80 = vunpack.c.0.s8 %v79
    %v81 = vlaneseq
    %v82 = vshrl.u32 %v81, 7
    %v83 = vsub.s32 %v80, %v82
    %v84 = vrot.slane %v70, %v83
    %v85 = vcombine.high %v77, %v77
    %v86 = vcombine.high %v84, %v84
    %vm91 = vcmask 1041408
    %v92 = vsel %vm91, %v77, 0.0
    %v93 = vrot.slane %v92, 4
    %v94 = vadd.f32 %v92, %v93
    %v95 = vrot.slane %v94, 2
    %v96 = vadd.f32 %v94, %v95
    %v97 = vrot.slane %v96, 1
    %v98 = vadd.f32 %v96, %v97
    %v99 = vsel %vm91, %v85, 0.0
    %v100 = vrot.slane %v99, 4
    %v101 = vadd.f32 %v99, %v100
    %v102 = vrot.slane %v101, 2
    %v103 = vadd.f32 %v101, %v102
    %v104 = vrot.slane %v103, 1
    %v105 = vadd.f32 %v103, %v104
    %v106 = vsel %vm91, %v84, 0.0
    %v107 = vrot.slane %v106, 4
    %v108 = vadd.f32 %v106, %v107
    %v109 = vrot.slane %v108, 2
    %v110 = vadd.f32 %v108, %v109
    %v111 = vrot.slane %v110, 1
    %v112 = vadd.f32 %v110, %v111
    %v113 = vsel %vm91, %v86, 0.0
    %v114 = vrot.slane %v113, 4
    %v115 = vadd.f32 %v113, %v114
    %v116 = vrot.slane %v115, 2
    %v117 = vadd.f32 %v115, %v116
    %v118 = vrot.slane %v117, 1
    %v119 = vadd.f32 %v117, %v118
    %v124 = vcombine.low %v98, %v105
    %v125 = vcombine.low %v112, %v119
    %v127 = vunpack.c.l.s4 1966171168
    %v128 = vunpack.c.0.s8 %v127
    %v129 = vlaneseq
    %v130 = vshrl.u32 %v129, 7
    %v131 = vsub.s32 %v128, %v130
    %v132 = vrot.slane %v124, %v131
    %v134 = vunpack.c.l.s4 1966171168
    %v135 = vunpack.c.0.s8 %v134
    %v136 = vlaneseq
    %v137 = vshrl.u32 %v136, 7
    %v138 = vsub.s32 %v135, %v137
    %v139 = vrot.slane %v125, %v138
    %v140 = vcombine.low %v132, %v139
    %v142 = vunpack.c.l.s4 1966171168
    %v143 = vunpack.c.0.s8 %v142
    %v144 = vlaneseq
    %v145 = vshrl.u32 %v144, 7
    %v146 = vsub.s32 %v143, %v145
    %v147 = vrot.slane %v140, %v146
    %v149 = vadd.f32 %v67, %v147
    %v150 = vlaneseq
    %vm151 = vcmp.ge.s32.totalorder %v150, 0
    %vm152 = vcmp.lt.s32.totalorder %v150, 512
    %vm153 = vmand %vm151, %vm152
    %154 = vst.msk [vmem:[%s2] ss:$8 sm:$0xf] %vm153, %v149
    %155 = vst.msk [vmem:[%s2] ss:$8 sm:$0x0] %vm153, %v149
    %s156 = scalar_lea.vmem %s2, 1
    %v157 = vld [vmem:[%s156] ss:$8 sm:$0xf]
    %v158 = vmul.f32 %v61, %v63
    %v160 = vcombine.high %v158, %v158
    %v162 = vunpack.c.l.s4 1983009808
    %v163 = vunpack.c.0.s8 %v162
    %v164 = vlaneseq
    %v165 = vshrl.u32 %v164, 7
    %v166 = vsub.s32 %v163, %v165
    %v167 = vrot.slane %v158, %v166
    %v169 = vunpack.c.l.s4 1983009808
    %v170 = vunpack.c.0.s8 %v169
    %v171 = vlaneseq
    %v172 = vshrl.u32 %v171, 7
    %v173 = vsub.s32 %v170, %v172
    %v174 = vrot.slane %v160, %v173
    %v175 = vcombine.high %v167, %v167
    %v176 = vcombine.high %v174, %v174
    %v181 = vsel %vm91, %v167, 0.0
    %v182 = vrot.slane %v181, 4
    %v183 = vadd.f32 %v181, %v182
    %v184 = vrot.slane %v183, 2
    %v185 = vadd.f32 %v183, %v184
    %v186 = vrot.slane %v185, 1
    %v187 = vadd.f32 %v185, %v186
    %v188 = vsel %vm91, %v175, 0.0
    %v189 = vrot.slane %v188, 4
    %v190 = vadd.f32 %v188, %v189
    %v191 = vrot.slane %v190, 2
    %v192 = vadd.f32 %v190, %v191
    %v193 = vrot.slane %v192, 1
    %v194 = vadd.f32 %v192, %v193
    %v195 = vsel %vm91, %v174, 0.0
    %v196 = vrot.slane %v195, 4
    %v197 = vadd.f32 %v195, %v196
    %v198 = vrot.slane %v197, 2
    %v199 = vadd.f32 %v197, %v198
    %v200 = vrot.slane %v199, 1
    %v201 = vadd.f32 %v199, %v200
    %v202 = vsel %vm91, %v176, 0.0
    %v203 = vrot.slane %v202, 4
    %v204 = vadd.f32 %v202, %v203
    %v205 = vrot.slane %v204, 2
    %v206 = vadd.f32 %v204, %v205
    %v207 = vrot.slane %v206, 1
    %v208 = vadd.f32 %v206, %v207
    %v213 = vcombine.low %v187, %v194
    %v214 = vcombine.low %v201, %v208
    %v216 = vunpack.c.l.s4 1966171168
    %v217 = vunpack.c.0.s8 %v216
    %v218 = vlaneseq
    %v219 = vshrl.u32 %v218, 7
    %v220 = vsub.s32 %v217, %v219
    %v221 = vrot.slane %v213, %v220
    %v223 = vunpack.c.l.s4 1966171168
    %v224 = vunpack.c.0.s8 %v223
    %v225 = vlaneseq
    %v226 = vshrl.u32 %v225, 7
    %v227 = vsub.s32 %v224, %v226
    %v228 = vrot.slane %v214, %v227
    %v229 = vcombine.low %v221, %v228
    %v231 = vunpack.c.l.s4 1966171168
    %v232 = vunpack.c.0.s8 %v231
    %v233 = vlaneseq
    %v234 = vshrl.u32 %v233, 7
    %v235 = vsub.s32 %v232, %v234
    %v236 = vrot.slane %v229, %v235
    %v238 = vadd.f32 %v157, %v236
    %239 = vst.msk [vmem:[%s156] ss:$8 sm:$0xf] %vm153, %v238
    %240 = vst.msk [vmem:[%s156] ss:$8 sm:$0x0] %vm153, %v238
    %s241 = scalar_lea.vmem %s2, 2
    %v242 = vld [vmem:[%s241] ss:$8 sm:$0xf]
    %v243 = vmul.f32 %v63, %v63
    %v245 = vcombine.high %v243, %v243
    %v247 = vunpack.c.l.s4 1983009808
    %v248 = vunpack.c.0.s8 %v247
    %v249 = vlaneseq
    %v250 = vshrl.u32 %v249, 7
    %v251 = vsub.s32 %v248, %v250
    %v252 = vrot.slane %v243, %v251
    %v254 = vunpack.c.l.s4 1983009808
    %v255 = vunpack.c.0.s8 %v254
    %v256 = vlaneseq
    %v257 = vshrl.u32 %v256, 7
    %v258 = vsub.s32 %v255, %v257
    %v259 = vrot.slane %v245, %v258
    %v260 = vcombine.high %v252, %v252
    %v261 = vcombine.high %v259, %v259
    %v266 = vsel %vm91, %v252, 0.0
    %v267 = vrot.slane %v266, 4
    %v268 = vadd.f32 %v266, %v267
    %v269 = vrot.slane %v268, 2
    %v270 = vadd.f32 %v268, %v269
    %v271 = vrot.slane %v270, 1
    %v272 = vadd.f32 %v270, %v271
    %v273 = vsel %vm91, %v260, 0.0
    %v274 = vrot.slane %v273, 4
    %v275 = vadd.f32 %v273, %v274
    %v276 = vrot.slane %v275, 2
    %v277 = vadd.f32 %v275, %v276
    %v278 = vrot.slane %v277, 1
    %v279 = vadd.f32 %v277, %v278
    %v280 = vsel %vm91, %v259, 0.0
    %v281 = vrot.slane %v280, 4
    %v282 = vadd.f32 %v280, %v281
    %v283 = vrot.slane %v282, 2
    %v284 = vadd.f32 %v282, %v283
    %v285 = vrot.slane %v284, 1
    %v286 = vadd.f32 %v284, %v285
    %v287 = vsel %vm91, %v261, 0.0
    %v288 = vrot.slane %v287, 4
    %v289 = vadd.f32 %v287, %v288
    %v290 = vrot.slane %v289, 2
    %v291 = vadd.f32 %v289, %v290
    %v292 = vrot.slane %v291, 1
    %v293 = vadd.f32 %v291, %v292
    %v298 = vcombine.low %v272, %v279
    %v299 = vcombine.low %v286, %v293
    %v301 = vunpack.c.l.s4 1966171168
    %v302 = vunpack.c.0.s8 %v301
    %v303 = vlaneseq
    %v304 = vshrl.u32 %v303, 7
    %v305 = vsub.s32 %v302, %v304
    %v306 = vrot.slane %v298, %v305
    %v308 = vunpack.c.l.s4 1966171168
    %v309 = vunpack.c.0.s8 %v308
    %v310 = vlaneseq
    %v311 = vshrl.u32 %v310, 7
    %v312 = vsub.s32 %v309, %v311
    %v313 = vrot.slane %v299, %v312
    %v314 = vcombine.low %v306, %v313
    %v316 = vunpack.c.l.s4 1966171168
    %v317 = vunpack.c.0.s8 %v316
    %v318 = vlaneseq
    %v319 = vshrl.u32 %v318, 7
    %v320 = vsub.s32 %v317, %v319
    %v321 = vrot.slane %v314, %v320
    %v323 = vadd.f32 %v242, %v321
    %324 = vst.msk [vmem:[%s241] ss:$8 sm:$0xf] %vm153, %v323
    %325 = vst.msk [vmem:[%s241] ss:$8 sm:$0x0] %vm153, %v323
    %s326 = scalar_lea.vmem %s2, 3
    %v327 = vld [vmem:[%s326] ss:$8 sm:$0xf]
    %v328 = vmul.f32 %v61, %v64
    %v330 = vcombine.high %v328, %v328
    %v332 = vunpack.c.l.s4 1983009808
    %v333 = vunpack.c.0.s8 %v332
    %v334 = vlaneseq
    %v335 = vshrl.u32 %v334, 7
    %v336 = vsub.s32 %v333, %v335
    %v337 = vrot.slane %v328, %v336
    %v339 = vunpack.c.l.s4 1983009808
    %v340 = vunpack.c.0.s8 %v339
    %v341 = vlaneseq
    %v342 = vshrl.u32 %v341, 7
    %v343 = vsub.s32 %v340, %v342
    %v344 = vrot.slane %v330, %v343
    %v345 = vcombine.high %v337, %v337
    %v346 = vcombine.high %v344, %v344
    %v351 = vsel %vm91, %v337, 0.0
    %v352 = vrot.slane %v351, 4
    %v353 = vadd.f32 %v351, %v352
    %v354 = vrot.slane %v353, 2
    %v355 = vadd.f32 %v353, %v354
    %v356 = vrot.slane %v355, 1
    %v357 = vadd.f32 %v355, %v356
    %v358 = vsel %vm91, %v345, 0.0
    %v359 = vrot.slane %v358, 4
    %v360 = vadd.f32 %v358, %v359
    %v361 = vrot.slane %v360, 2
    %v362 = vadd.f32 %v360, %v361
    %v363 = vrot.slane %v362, 1
    %v364 = vadd.f32 %v362, %v363
    %v365 = vsel %vm91, %v344, 0.0
    %v366 = vrot.slane %v365, 4
    %v367 = vadd.f32 %v365, %v366
    %v368 = vrot.slane %v367, 2
    %v369 = vadd.f32 %v367, %v368
    %v370 = vrot.slane %v369, 1
    %v371 = vadd.f32 %v369, %v370
    %v372 = vsel %vm91, %v346, 0.0
    %v373 = vrot.slane %v372, 4
    %v374 = vadd.f32 %v372, %v373
    %v375 = vrot.slane %v374, 2
    %v376 = vadd.f32 %v374, %v375
    %v377 = vrot.slane %v376, 1
    %v378 = vadd.f32 %v376, %v377
    %v383 = vcombine.low %v357, %v364
    %v384 = vcombine.low %v371, %v378
    %v386 = vunpack.c.l.s4 1966171168
    %v387 = vunpack.c.0.s8 %v386
    %v388 = vlaneseq
    %v389 = vshrl.u32 %v388, 7
    %v390 = vsub.s32 %v387, %v389
    %v391 = vrot.slane %v383, %v390
    %v393 = vunpack.c.l.s4 1966171168
    %v394 = vunpack.c.0.s8 %v393
    %v395 = vlaneseq
    %v396 = vshrl.u32 %v395, 7
    %v397 = vsub.s32 %v394, %v396
    %v398 = vrot.slane %v384, %v397
    %v399 = vcombine.low %v391, %v398
    %v401 = vunpack.c.l.s4 1966171168
    %v402 = vunpack.c.0.s8 %v401
    %v403 = vlaneseq
    %v404 = vshrl.u32 %v403, 7
    %v405 = vsub.s32 %v402, %v404
    %v406 = vrot.slane %v399, %v405
    %v408 = vadd.f32 %v327, %v406
    %409 = vst.msk [vmem:[%s326] ss:$8 sm:$0xf] %vm153, %v408
    %410 = vst.msk [vmem:[%s326] ss:$8 sm:$0x0] %vm153, %v408
    %s411 = scalar_lea.vmem %s2, 4
    %v412 = vld [vmem:[%s411] ss:$8 sm:$0xf]
    %v413 = vmul.f32 %v61, %v66
    %v415 = vcombine.high %v413, %v413
    %v417 = vunpack.c.l.s4 1983009808
    %v418 = vunpack.c.0.s8 %v417
    %v419 = vlaneseq
    %v420 = vshrl.u32 %v419, 7
    %v421 = vsub.s32 %v418, %v420
    %v422 = vrot.slane %v413, %v421
    %v424 = vunpack.c.l.s4 1983009808
    %v425 = vunpack.c.0.s8 %v424
    %v426 = vlaneseq
    %v427 = vshrl.u32 %v426, 7
    %v428 = vsub.s32 %v425, %v427
    %v429 = vrot.slane %v415, %v428
    %v430 = vcombine.high %v422, %v422
    %v431 = vcombine.high %v429, %v429
    %v436 = vsel %vm91, %v422, 0.0
    %v437 = vrot.slane %v436, 4
    %v438 = vadd.f32 %v436, %v437
    %v439 = vrot.slane %v438, 2
    %v440 = vadd.f32 %v438, %v439
    %v441 = vrot.slane %v440, 1
    %v442 = vadd.f32 %v440, %v441
    %v443 = vsel %vm91, %v430, 0.0
    %v444 = vrot.slane %v443, 4
    %v445 = vadd.f32 %v443, %v444
    %v446 = vrot.slane %v445, 2
    %v447 = vadd.f32 %v445, %v446
    %v448 = vrot.slane %v447, 1
    %v449 = vadd.f32 %v447, %v448
    %v450 = vsel %vm91, %v429, 0.0
    %v451 = vrot.slane %v450, 4
    %v452 = vadd.f32 %v450, %v451
    %v453 = vrot.slane %v452, 2
    %v454 = vadd.f32 %v452, %v453
    %v455 = vrot.slane %v454, 1
    %v456 = vadd.f32 %v454, %v455
    %v457 = vsel %vm91, %v431, 0.0
    %v458 = vrot.slane %v457, 4
    %v459 = vadd.f32 %v457, %v458
    %v460 = vrot.slane %v459, 2
    %v461 = vadd.f32 %v459, %v460
    %v462 = vrot.slane %v461, 1
    %v463 = vadd.f32 %v461, %v462
    %v468 = vcombine.low %v442, %v449
    %v469 = vcombine.low %v456, %v463
    %v471 = vunpack.c.l.s4 1966171168
    %v472 = vunpack.c.0.s8 %v471
    %v473 = vlaneseq
    %v474 = vshrl.u32 %v473, 7
    %v475 = vsub.s32 %v472, %v474
    %v476 = vrot.slane %v468, %v475
    %v478 = vunpack.c.l.s4 1966171168
    %v479 = vunpack.c.0.s8 %v478
    %v480 = vlaneseq
    %v481 = vshrl.u32 %v480, 7
    %v482 = vsub.s32 %v479, %v481
    %v483 = vrot.slane %v469, %v482
    %v484 = vcombine.low %v476, %v483
    %v486 = vunpack.c.l.s4 1966171168
    %v487 = vunpack.c.0.s8 %v486
    %v488 = vlaneseq
    %v489 = vshrl.u32 %v488, 7
    %v490 = vsub.s32 %v487, %v489
    %v491 = vrot.slane %v484, %v490
    %v493 = vadd.f32 %v412, %v491
    %494 = vst.msk [vmem:[%s411] ss:$8 sm:$0xf] %vm153, %v493
    %495 = vst.msk [vmem:[%s411] ss:$8 sm:$0x0] %vm153, %v493
    %s496 = scalar_lea.vmem %s2, 5
    %v497 = vld [vmem:[%s496] ss:$8 sm:$0xf]
    %v498 = vmul.f32 %v63, %v64
    %v500 = vcombine.high %v498, %v498
    %v502 = vunpack.c.l.s4 1983009808
    %v503 = vunpack.c.0.s8 %v502
    %v504 = vlaneseq
    %v505 = vshrl.u32 %v504, 7
    %v506 = vsub.s32 %v503, %v505
    %v507 = vrot.slane %v498, %v506
    %v509 = vunpack.c.l.s4 1983009808
    %v510 = vunpack.c.0.s8 %v509
    %v511 = vlaneseq
    %v512 = vshrl.u32 %v511, 7
    %v513 = vsub.s32 %v510, %v512
    %v514 = vrot.slane %v500, %v513
    %v515 = vcombine.high %v507, %v507
    %v516 = vcombine.high %v514, %v514
    %v521 = vsel %vm91, %v507, 0.0
    %v522 = vrot.slane %v521, 4
    %v523 = vadd.f32 %v521, %v522
    %v524 = vrot.slane %v523, 2
    %v525 = vadd.f32 %v523, %v524
    %v526 = vrot.slane %v525, 1
    %v527 = vadd.f32 %v525, %v526
    %v528 = vsel %vm91, %v515, 0.0
    %v529 = vrot.slane %v528, 4
    %v530 = vadd.f32 %v528, %v529
    %v531 = vrot.slane %v530, 2
    %v532 = vadd.f32 %v530, %v531
    %v533 = vrot.slane %v532, 1
    %v534 = vadd.f32 %v532, %v533
    %v535 = vsel %vm91, %v514, 0.0
    %v536 = vrot.slane %v535, 4
    %v537 = vadd.f32 %v535, %v536
    %v538 = vrot.slane %v537, 2
    %v539 = vadd.f32 %v537, %v538
    %v540 = vrot.slane %v539, 1
    %v541 = vadd.f32 %v539, %v540
    %v542 = vsel %vm91, %v516, 0.0
    %v543 = vrot.slane %v542, 4
    %v544 = vadd.f32 %v542, %v543
    %v545 = vrot.slane %v544, 2
    %v546 = vadd.f32 %v544, %v545
    %v547 = vrot.slane %v546, 1
    %v548 = vadd.f32 %v546, %v547
    %v553 = vcombine.low %v527, %v534
    %v554 = vcombine.low %v541, %v548
    %v556 = vunpack.c.l.s4 1966171168
    %v557 = vunpack.c.0.s8 %v556
    %v558 = vlaneseq
    %v559 = vshrl.u32 %v558, 7
    %v560 = vsub.s32 %v557, %v559
    %v561 = vrot.slane %v553, %v560
    %v563 = vunpack.c.l.s4 1966171168
    %v564 = vunpack.c.0.s8 %v563
    %v565 = vlaneseq
    %v566 = vshrl.u32 %v565, 7
    %v567 = vsub.s32 %v564, %v566
    %v568 = vrot.slane %v554, %v567
    %v569 = vcombine.low %v561, %v568
    %v571 = vunpack.c.l.s4 1966171168
    %v572 = vunpack.c.0.s8 %v571
    %v573 = vlaneseq
    %v574 = vshrl.u32 %v573, 7
    %v575 = vsub.s32 %v572, %v574
    %v576 = vrot.slane %v569, %v575
    %v578 = vadd.f32 %v497, %v576
    %579 = vst.msk [vmem:[%s496] ss:$8 sm:$0xf] %vm153, %v578
    %580 = vst.msk [vmem:[%s496] ss:$8 sm:$0x0] %vm153, %v578
    %s581 = scalar_lea.vmem %s2, 6
    %v582 = vld [vmem:[%s581] ss:$8 sm:$0xf]
    %v583 = vmul.f32 %v63, %v66
    %v585 = vcombine.high %v583, %v583
    %v587 = vunpack.c.l.s4 1983009808
    %v588 = vunpack.c.0.s8 %v587
    %v589 = vlaneseq
    %v590 = vshrl.u32 %v589, 7
    %v591 = vsub.s32 %v588, %v590
    %v592 = vrot.slane %v583, %v591
    %v594 = vunpack.c.l.s4 1983009808
    %v595 = vunpack.c.0.s8 %v594
    %v596 = vlaneseq
    %v597 = vshrl.u32 %v596, 7
    %v598 = vsub.s32 %v595, %v597
    %v599 = vrot.slane %v585, %v598
    %v600 = vcombine.high %v592, %v592
    %v601 = vcombine.high %v599, %v599
    %v606 = vsel %vm91, %v592, 0.0
    %v607 = vrot.slane %v606, 4
    %v608 = vadd.f32 %v606, %v607
    %v609 = vrot.slane %v608, 2
    %v610 = vadd.f32 %v608, %v609
    %v611 = vrot.slane %v610, 1
    %v612 = vadd.f32 %v610, %v611
    %v613 = vsel %vm91, %v600, 0.0
    %v614 = vrot.slane %v613, 4
    %v615 = vadd.f32 %v613, %v614
    %v616 = vrot.slane %v615, 2
    %v617 = vadd.f32 %v615, %v616
    %v618 = vrot.slane %v617, 1
    %v619 = vadd.f32 %v617, %v618
    %v620 = vsel %vm91, %v599, 0.0
    %v621 = vrot.slane %v620, 4
    %v622 = vadd.f32 %v620, %v621
    %v623 = vrot.slane %v622, 2
    %v624 = vadd.f32 %v622, %v623
    %v625 = vrot.slane %v624, 1
    %v626 = vadd.f32 %v624, %v625
    %v627 = vsel %vm91, %v601, 0.0
    %v628 = vrot.slane %v627, 4
    %v629 = vadd.f32 %v627, %v628
    %v630 = vrot.slane %v629, 2
    %v631 = vadd.f32 %v629, %v630
    %v632 = vrot.slane %v631, 1
    %v633 = vadd.f32 %v631, %v632
    %v638 = vcombine.low %v612, %v619
    %v639 = vcombine.low %v626, %v633
    %v641 = vunpack.c.l.s4 1966171168
    %v642 = vunpack.c.0.s8 %v641
    %v643 = vlaneseq
    %v644 = vshrl.u32 %v643, 7
    %v645 = vsub.s32 %v642, %v644
    %v646 = vrot.slane %v638, %v645
    %v648 = vunpack.c.l.s4 1966171168
    %v649 = vunpack.c.0.s8 %v648
    %v650 = vlaneseq
    %v651 = vshrl.u32 %v650, 7
    %v652 = vsub.s32 %v649, %v651
    %v653 = vrot.slane %v639, %v652
    %v654 = vcombine.low %v646, %v653
    %v656 = vunpack.c.l.s4 1966171168
    %v657 = vunpack.c.0.s8 %v656
    %v658 = vlaneseq
    %v659 = vshrl.u32 %v658, 7
    %v660 = vsub.s32 %v657, %v659
    %v661 = vrot.slane %v654, %v660
    %v663 = vadd.f32 %v582, %v661
    %664 = vst.msk [vmem:[%s581] ss:$8 sm:$0xf] %vm153, %v663
    %665 = vst.msk [vmem:[%s581] ss:$8 sm:$0x0] %vm153, %v663
    %s666 = scalar_lea.vmem %s2, 7
    %v667 = vld [vmem:[%s666] ss:$8 sm:$0xf]
    %v668 = vmul.f32 %v64, %v64
    %v670 = vcombine.high %v668, %v668
    %v672 = vunpack.c.l.s4 1983009808
    %v673 = vunpack.c.0.s8 %v672
    %v674 = vlaneseq
    %v675 = vshrl.u32 %v674, 7
    %v676 = vsub.s32 %v673, %v675
    %v677 = vrot.slane %v668, %v676
    %v679 = vunpack.c.l.s4 1983009808
    %v680 = vunpack.c.0.s8 %v679
    %v681 = vlaneseq
    %v682 = vshrl.u32 %v681, 7
    %v683 = vsub.s32 %v680, %v682
    %v684 = vrot.slane %v670, %v683
    %v685 = vcombine.high %v677, %v677
    %v686 = vcombine.high %v684, %v684
    %v691 = vsel %vm91, %v677, 0.0
    %v692 = vrot.slane %v691, 4
    %v693 = vadd.f32 %v691, %v692
    %v694 = vrot.slane %v693, 2
    %v695 = vadd.f32 %v693, %v694
    %v696 = vrot.slane %v695, 1
    %v697 = vadd.f32 %v695, %v696
    %v698 = vsel %vm91, %v685, 0.0
    %v699 = vrot.slane %v698, 4
    %v700 = vadd.f32 %v698, %v699
    %v701 = vrot.slane %v700, 2
    %v702 = vadd.f32 %v700, %v701
    %v703 = vrot.slane %v702, 1
    %v704 = vadd.f32 %v702, %v703
    %v705 = vsel %vm91, %v684, 0.0
    %v706 = vrot.slane %v705, 4
    %v707 = vadd.f32 %v705, %v706
    %v708 = vrot.slane %v707, 2
    %v709 = vadd.f32 %v707, %v708
    %v710 = vrot.slane %v709, 1
    %v711 = vadd.f32 %v709, %v710
    %v712 = vsel %vm91, %v686, 0.0
    %v713 = vrot.slane %v712, 4
    %v714 = vadd.f32 %v712, %v713
    %v715 = vrot.slane %v714, 2
    %v716 = vadd.f32 %v714, %v715
    %v717 = vrot.slane %v716, 1
    %v718 = vadd.f32 %v716, %v717
    %v723 = vcombine.low %v697, %v704
    %v724 = vcombine.low %v711, %v718
    %v726 = vunpack.c.l.s4 1966171168
    %v727 = vunpack.c.0.s8 %v726
    %v728 = vlaneseq
    %v729 = vshrl.u32 %v728, 7
    %v730 = vsub.s32 %v727, %v729
    %v731 = vrot.slane %v723, %v730
    %v733 = vunpack.c.l.s4 1966171168
    %v734 = vunpack.c.0.s8 %v733
    %v735 = vlaneseq
    %v736 = vshrl.u32 %v735, 7
    %v737 = vsub.s32 %v734, %v736
    %v738 = vrot.slane %v724, %v737
    %v739 = vcombine.low %v731, %v738
    %v741 = vunpack.c.l.s4 1966171168
    %v742 = vunpack.c.0.s8 %v741
    %v743 = vlaneseq
    %v744 = vshrl.u32 %v743, 7
    %v745 = vsub.s32 %v742, %v744
    %v746 = vrot.slane %v739, %v745
    %v748 = vadd.f32 %v667, %v746
    %749 = vst.msk [vmem:[%s666] ss:$8 sm:$0xf] %vm153, %v748
    %750 = vst.msk [vmem:[%s666] ss:$8 sm:$0x0] %vm153, %v748
    %s751 = scalar_lea.vmem %s2, 32
    %v752 = vld [vmem:[%s751] ss:$8 sm:$0xf]
    %v753 = vmul.f32 %v64, %v66
    %v755 = vcombine.high %v753, %v753
    %v757 = vunpack.c.l.s4 1983009808
    %v758 = vunpack.c.0.s8 %v757
    %v759 = vlaneseq
    %v760 = vshrl.u32 %v759, 7
    %v761 = vsub.s32 %v758, %v760
    %v762 = vrot.slane %v753, %v761
    %v764 = vunpack.c.l.s4 1983009808
    %v765 = vunpack.c.0.s8 %v764
    %v766 = vlaneseq
    %v767 = vshrl.u32 %v766, 7
    %v768 = vsub.s32 %v765, %v767
    %v769 = vrot.slane %v755, %v768
    %v770 = vcombine.high %v762, %v762
    %v771 = vcombine.high %v769, %v769
    %v776 = vsel %vm91, %v762, 0.0
    %v777 = vrot.slane %v776, 4
    %v778 = vadd.f32 %v776, %v777
    %v779 = vrot.slane %v778, 2
    %v780 = vadd.f32 %v778, %v779
    %v781 = vrot.slane %v780, 1
    %v782 = vadd.f32 %v780, %v781
    %v783 = vsel %vm91, %v770, 0.0
    %v784 = vrot.slane %v783, 4
    %v785 = vadd.f32 %v783, %v784
    %v786 = vrot.slane %v785, 2
    %v787 = vadd.f32 %v785, %v786
    %v788 = vrot.slane %v787, 1
    %v789 = vadd.f32 %v787, %v788
    %v790 = vsel %vm91, %v769, 0.0
    %v791 = vrot.slane %v790, 4
    %v792 = vadd.f32 %v790, %v791
    %v793 = vrot.slane %v792, 2
    %v794 = vadd.f32 %v792, %v793
    %v795 = vrot.slane %v794, 1
    %v796 = vadd.f32 %v794, %v795
    %v797 = vsel %vm91, %v771, 0.0
    %v798 = vrot.slane %v797, 4
    %v799 = vadd.f32 %v797, %v798
    %v800 = vrot.slane %v799, 2
    %v801 = vadd.f32 %v799, %v800
    %v802 = vrot.slane %v801, 1
    %v803 = vadd.f32 %v801, %v802
    %v808 = vcombine.low %v782, %v789
    %v809 = vcombine.low %v796, %v803
    %v811 = vunpack.c.l.s4 1966171168
    %v812 = vunpack.c.0.s8 %v811
    %v813 = vlaneseq
    %v814 = vshrl.u32 %v813, 7
    %v815 = vsub.s32 %v812, %v814
    %v816 = vrot.slane %v808, %v815
    %v818 = vunpack.c.l.s4 1966171168
    %v819 = vunpack.c.0.s8 %v818
    %v820 = vlaneseq
    %v821 = vshrl.u32 %v820, 7
    %v822 = vsub.s32 %v819, %v821
    %v823 = vrot.slane %v809, %v822
    %v824 = vcombine.low %v816, %v823
    %v826 = vunpack.c.l.s4 1966171168
    %v827 = vunpack.c.0.s8 %v826
    %v828 = vlaneseq
    %v829 = vshrl.u32 %v828, 7
    %v830 = vsub.s32 %v827, %v829
    %v831 = vrot.slane %v824, %v830
    %v833 = vadd.f32 %v752, %v831
    %834 = vst.msk [vmem:[%s751] ss:$8 sm:$0xf] %vm153, %v833
    %835 = vst.msk [vmem:[%s751] ss:$8 sm:$0x0] %vm153, %v833
    %s836 = scalar_lea.vmem %s2, 33
    %v837 = vld [vmem:[%s836] ss:$8 sm:$0xf]
    %v838 = vmul.f32 %v66, %v66
    %v840 = vcombine.high %v838, %v838
    %v842 = vunpack.c.l.s4 1983009808
    %v843 = vunpack.c.0.s8 %v842
    %v844 = vlaneseq
    %v845 = vshrl.u32 %v844, 7
    %v846 = vsub.s32 %v843, %v845
    %v847 = vrot.slane %v838, %v846
    %v849 = vunpack.c.l.s4 1983009808
    %v850 = vunpack.c.0.s8 %v849
    %v851 = vlaneseq
    %v852 = vshrl.u32 %v851, 7
    %v853 = vsub.s32 %v850, %v852
    %v854 = vrot.slane %v840, %v853
    %v855 = vcombine.high %v847, %v847
    %v856 = vcombine.high %v854, %v854
    %v861 = vsel %vm91, %v847, 0.0
    %v862 = vrot.slane %v861, 4
    %v863 = vadd.f32 %v861, %v862
    %v864 = vrot.slane %v863, 2
    %v865 = vadd.f32 %v863, %v864
    %v866 = vrot.slane %v865, 1
    %v867 = vadd.f32 %v865, %v866
    %v868 = vsel %vm91, %v855, 0.0
    %v869 = vrot.slane %v868, 4
    %v870 = vadd.f32 %v868, %v869
    %v871 = vrot.slane %v870, 2
    %v872 = vadd.f32 %v870, %v871
    %v873 = vrot.slane %v872, 1
    %v874 = vadd.f32 %v872, %v873
    %v875 = vsel %vm91, %v854, 0.0
    %v876 = vrot.slane %v875, 4
    %v877 = vadd.f32 %v875, %v876
    %v878 = vrot.slane %v877, 2
    %v879 = vadd.f32 %v877, %v878
    %v880 = vrot.slane %v879, 1
    %v881 = vadd.f32 %v879, %v880
    %v882 = vsel %vm91, %v856, 0.0
    %v883 = vrot.slane %v882, 4
    %v884 = vadd.f32 %v882, %v883
    %v885 = vrot.slane %v884, 2
    %v886 = vadd.f32 %v884, %v885
    %v887 = vrot.slane %v886, 1
    %v888 = vadd.f32 %v886, %v887
    %v893 = vcombine.low %v867, %v874
    %v894 = vcombine.low %v881, %v888
    %v896 = vunpack.c.l.s4 1966171168
    %v897 = vunpack.c.0.s8 %v896
    %v898 = vlaneseq
    %v899 = vshrl.u32 %v898, 7
    %v900 = vsub.s32 %v897, %v899
    %v901 = vrot.slane %v893, %v900
    %v903 = vunpack.c.l.s4 1966171168
    %v904 = vunpack.c.0.s8 %v903
    %v905 = vlaneseq
    %v906 = vshrl.u32 %v905, 7
    %v907 = vsub.s32 %v904, %v906
    %v908 = vrot.slane %v894, %v907
    %v909 = vcombine.low %v901, %v908
    %v911 = vunpack.c.l.s4 1966171168
    %v912 = vunpack.c.0.s8 %v911
    %v913 = vlaneseq
    %v914 = vshrl.u32 %v913, 7
    %v915 = vsub.s32 %v912, %v914
    %v916 = vrot.slane %v909, %v915
    %v918 = vadd.f32 %v837, %v916
    %919 = vst.msk [vmem:[%s836] ss:$8 sm:$0xf] %vm153, %v918
    %920 = vst.msk [vmem:[%s836] ss:$8 sm:$0x0] %vm153, %v918
    // Predicated region
    $region22: #{tpu_custom_call.1} parent=1 // pred_check
      _
    $region23: #{tpu_custom_call.1} parent=1 // pred_check_branch
      %922 = sbr.rel (0) target = $region25
    $region24: #{tpu_custom_call.1} parent=1 // pred_region
      _
    $region25: #{tpu_custom_call.1} parent=1 // pred_fallthru
      _
    // Predicated region
    $region26: #{tpu_custom_call.1} parent=1 // pred_check
      _
    $region27: #{tpu_custom_call.1} parent=1 // pred_check_branch
      %924 = sbr.rel (0) target = $region29
    $region28: #{tpu_custom_call.1} parent=1 // pred_region
      _
    $region29: #{tpu_custom_call.1} parent=1 // pred_fallthru
      _
    %925 = vsyncpa [#allocation3], 1
    %926 = vsyncpa [#allocation5], 1

</llo_original>
